<compile_context>
chip_gen: v6e
topology: v6e:2x2x1
jax: 0.10.0
libtpu: 0.0.40
codegen_flags: <defaults>
</compile_context>

<pallas_src>
import jax
import jax.numpy as jnp
from jax.experimental import pallas as pl
from jax.experimental.pallas import tpu as pltpu

# ---- module hyper-parameters (small, consistent with the module) -----------
TEMPLATE = (4, 4)                 # template
SPELL_LEN = sum(TEMPLATE)         # L = 8   (multiple of 8 -> sublane friendly)
HIDDEN = 128                      # hidden_size (multiple of 128 -> lane dense)
RELATION_NUM = 4                  # relation_num
VOCAB = SPELL_LEN * RELATION_NUM  # embedding rows = L * R
BATCH = 2

# Stage the whole table in VMEM when it is small (leave ample headroom under
# the default scoped-VMEM limit together with the double-buffered output).
_VMEM_TABLE_BYTES_LIMIT = 8 * 1024 * 1024


def _whole_table_kernel(rs_ref, emb_ref, out_ref):
    """Single grid step; entire embedding table resident in VMEM.

    rs_ref : SMEM scalar-prefetch ref, shape (B,), int32 relation ids
    emb_ref: VMEM ref, (VOCAB, HIDDEN) full embedding table
    out_ref: VMEM ref, (B*SPELL_LEN, HIDDEN) output slab
    """
    batch = rs_ref.shape[0]
    for b in range(batch):  # static unroll — B is a compile-time constant
        # rs[b]*L is always a multiple of L (=8): sublane-aligned slice.
        start = pl.multiple_of(rs_ref[b] * SPELL_LEN, SPELL_LEN)
        out_ref[pl.ds(b * SPELL_LEN, SPELL_LEN), :] = (
            emb_ref[pl.ds(start, SPELL_LEN), :])


def _per_batch_gather_kernel(rs_ref, emb_ref, out_ref):
    """One grid step = one batch element (gather done by the input BlockSpec).

    rs_ref : SMEM scalar-prefetch ref, shape (B,), int32 (unused in the body)
    emb_ref: VMEM ref, the (SPELL_LEN, HIDDEN) rows emb[rs[b]*L : rs[b]*L+L, :]
    out_ref: VMEM ref, (SPELL_LEN, HIDDEN) output tile for this batch element
    """
    del rs_ref
    out_ref[...] = emb_ref[...]


def ke_prompt_encoder_forward(rs_tensor, embedding_relation):
    """rs_tensor: [B] int relation ids; embedding_relation: [VOCAB, HIDDEN].

    Returns [B, SPELL_LEN, HIDDEN] (== torch embedding lookup result).
    """
    if SPELL_LEN == 0:
        return None
    B = rs_tensor.shape[0]
    vocab, hidden = embedding_relation.shape
    dtype = embedding_relation.dtype

    # No runtime bounds check on DMA/VMEM indexing -> clamp relation ids.
    rs = jnp.clip(rs_tensor.astype(jnp.int32), 0, RELATION_NUM - 1)

    table_bytes = vocab * hidden * jnp.dtype(dtype).itemsize

    if table_bytes <= _VMEM_TABLE_BYTES_LIMIT:
        # ---- single-step path: full table in VMEM, in-kernel gather --------
        grid_spec = pltpu.PrefetchScalarGridSpec(
            num_scalar_prefetch=1,
            grid=(1,),
            in_specs=[
                pl.BlockSpec((vocab, hidden), lambda i, rs_ref: (0, 0)),
            ],
            # One lane-dense (B*L, 128) slab -> single unmasked, contiguous
            # writeback instead of B tiny ones.
            out_specs=pl.BlockSpec((B * SPELL_LEN, hidden),
                                   lambda i, rs_ref: (0, 0)),
        )
        out_flat = pl.pallas_call(
            _whole_table_kernel,
            out_shape=jax.ShapeDtypeStruct((B * SPELL_LEN, hidden), dtype),
            grid_spec=grid_spec,
            compiler_params=pltpu.CompilerParams(
                dimension_semantics=("arbitrary",)),
        )(rs, embedding_relation)
    else:
        # ---- fallback: per-batch gather expressed in the input BlockSpec ---
        grid_spec = pltpu.PrefetchScalarGridSpec(
            num_scalar_prefetch=1,
            grid=(B,),
            in_specs=[
                # Block height == L, so block index rs[b] selects rows
                # [rs[b]*L, rs[b]*L + L).  Only these L rows are DMA'd.
                pl.BlockSpec((SPELL_LEN, hidden),
                             lambda b, rs_ref: (rs_ref[b], 0)),
            ],
            out_specs=pl.BlockSpec((SPELL_LEN, hidden),
                                   lambda b, rs_ref: (b, 0)),
        )
        out_flat = pl.pallas_call(
            _per_batch_gather_kernel,
            out_shape=jax.ShapeDtypeStruct((B * SPELL_LEN, hidden), dtype),
            grid_spec=grid_spec,
            compiler_params=pltpu.CompilerParams(
                # Independent batch iterations: allow megacore sharding.
                dimension_semantics=("parallel",)),
        )(rs, embedding_relation)

    return out_flat.reshape(B, SPELL_LEN, hidden)


def reference_forward(rs_tensor, embedding_relation):
    seq_indices = jnp.arange(SPELL_LEN, dtype=jnp.int32)
    idx = seq_indices[None, :] + rs_tensor[:, None] * SPELL_LEN  # [B, L]
    return jnp.take(embedding_relation, idx, axis=0)             # [B, L, H]


if __name__ == "__main__":
    key = jax.random.PRNGKey(0)
    k_emb, k_rs = jax.random.split(key)

    # torch.nn.Embedding default init ~ N(0, 1)
    embedding_relation = jax.random.normal(
        k_emb, (VOCAB, HIDDEN), dtype=jnp.float32)
    # relation ids in [0, RELATION_NUM)
    rs_tensor = jax.random.randint(
        k_rs, (BATCH,), 0, RELATION_NUM, dtype=jnp.int32)

    out = ke_prompt_encoder_forward(rs_tensor, embedding_relation)
    out = jax.block_until_ready(out)

    ref = reference_forward(rs_tensor, embedding_relation)
    assert out.shape == (BATCH, SPELL_LEN, HIDDEN)
    assert jnp.allclose(out, ref), "Pallas output mismatch vs reference"

    print("KERNEL_OK")
</pallas_src>

<mosaic_0001>
module attributes {stable_mosaic.version = 11 : i64} {
  func.func @_whole_table_kernel(%arg0: i32, %arg1: memref<2xi32, #tpu.memory_space<smem>>, %arg2: memref<32x128xf32, #tpu.memory_space<vmem>>, %arg3: memref<16x128xf32, #tpu.memory_space<vmem>>) attributes {dimension_semantics = [#tpu.dimension_semantics<arbitrary>], iteration_bounds = array<i64: 1>, scalar_prefetch = 1 : i64, scratch_operands = 0 : i64, tpu.core_type = #tpu.core_type<tc>, window_params = [{pipeline_mode = #tpu.pipeline_mode<synchronous>, transform_indices = @transform_0, window_bounds = array<i64: 32, 128>}, {pipeline_mode = #tpu.pipeline_mode<synchronous>, transform_indices = @transform_1, window_bounds = array<i64: 16, 128>}]} {
    %c0 = arith.constant 0 : index
    %0 = memref.load %arg1[%c0] : memref<2xi32, #tpu.memory_space<smem>>
    %c8_i32 = arith.constant 8 : i32
    %1 = arith.muli %0, %c8_i32 : i32
    %2 = tpu.assume_multiple %1, 8 : i32
    %3 = arith.index_cast %2 : i32 to index
    %c0_0 = arith.constant 0 : index
    %4 = vector.load %arg2[%3, %c0_0] : memref<32x128xf32, #tpu.memory_space<vmem>>, vector<8x128xf32>
    %c0_1 = arith.constant 0 : index
    %c0_2 = arith.constant 0 : index
    %5 = vector.load %arg3[%c0_1, %c0_2] : memref<16x128xf32, #tpu.memory_space<vmem>>, vector<8x128xf32>
    tpu.vector_store %arg3[%c0_1, %c0_2], %4 {strides = array<i32>} : memref<16x128xf32, #tpu.memory_space<vmem>>, vector<8x128xf32>,
    %c1 = arith.constant 1 : index
    %6 = memref.load %arg1[%c1] : memref<2xi32, #tpu.memory_space<smem>>
    %c8_i32_3 = arith.constant 8 : i32
    %7 = arith.muli %6, %c8_i32_3 : i32
    %8 = tpu.assume_multiple %7, 8 : i32
    %9 = arith.index_cast %8 : i32 to index
    %c0_4 = arith.constant 0 : index
    %10 = vector.load %arg2[%9, %c0_4] : memref<32x128xf32, #tpu.memory_space<vmem>>, vector<8x128xf32>
    %c8 = arith.constant 8 : index
    %c0_5 = arith.constant 0 : index
    %11 = vector.load %arg3[%c8, %c0_5] : memref<16x128xf32, #tpu.memory_space<vmem>>, vector<8x128xf32>
    tpu.vector_store %arg3[%c8, %c0_5], %10 {strides = array<i32>} : memref<16x128xf32, #tpu.memory_space<vmem>>, vector<8x128xf32>,
    return
  }
  func.func @transform_0(%arg0: i32, %arg1: memref<2xi32, #tpu.memory_space<smem>>) -> (i32, i32) {
    %c0_i32 = arith.constant 0 : i32
    %c0_i32_0 = arith.constant 0 : i32
    %c0_i32_1 = arith.constant 0 : i32
    return %c0_i32, %c0_i32_0 : i32, i32
  }
  func.func @transform_1(%arg0: i32, %arg1: memref<2xi32, #tpu.memory_space<smem>>) -> (i32, i32) {
    %c0_i32 = arith.constant 0 : i32
    %c0_i32_0 = arith.constant 0 : i32
    %c0_i32_1 = arith.constant 0 : i32
    return %c0_i32, %c0_i32_0 : i32, i32
  }
}

</mosaic_0001>

<llo_original>
// kernel: tpu_custom_call.1
$region0: #{tpu_custom_call.1}
  #allocation0 [shape = 'u32[]', space=smem, size = 0x4, offset = 0x4, fixed_abs, tag = 'smem constant byte address 0x4 - core index']
  #allocation1 [shape = 'u32[144,128]{1,0:T(1,128)}', space=vmem, size = 0x12000, scoped, tag = 'internal scratch']
  #allocation2 [shape = 's32[1]{0}', space=sflag, size = 0x4, scoped, tag = 'scoped memory for tpu_custom_call.1']
  #allocation3 [shape = 'u8[512]{0}', space=smem, size = 0x200, scoped, tag = 'prefetched SMEM operand 0']
  %s0 = inlined_call_operand.hbm [shape: s32[2], index: 0, kind: input, shape index: {}]
  %s1 = inlined_call_operand.hbm [shape: f32[32,128], index: 1, kind: input, shape index: {}]
  %s2 = inlined_call_operand.hbm [shape: f32[16,128], index: 2, kind: output, shape index: {}]
  %s3 = sld [smem:[#allocation0]]
  $region18: #{tpu_custom_call.1} parent=0
    _
  %s5 = ssub.s32 1, %s3
  %s6 = scalar_select 0, %s5, %s3
  %8 = dma.hbm_to_smem %s0, 16, [#allocation3], [#allocation2]
  %9 = dma.done [#allocation2], 16
  %10 = sfence
  $region1: #{tpu_custom_call.1} parent=0
    #allocation4 [shape = 'u8[16384]{0}', space=vmem, size = 0x4000, scoped, tag = 'input window, operand 1, single buffered']
    #allocation5 [shape = 's32[1]{0}', space=sflag, size = 0x4, scoped, tag = 'scoped memory for tpu_custom_call.1']
    #allocation6 [shape = 's32[1]{0}', space=sflag, size = 0x4, scoped, tag = 'scoped memory for tpu_custom_call.1']
    #allocation7 [shape = 'u8[8192]{0}', space=vmem, size = 0x2000, scoped, tag = 'output window, operand 0, single buffered']
    %11 = vsyncpa [#allocation5], 0
    %12 = vsyncpa [#allocation6], 0
    // Predicated region
    $region2: #{tpu_custom_call.1} parent=1 // pred_check
      _
    $region3: #{tpu_custom_call.1} parent=1 // pred_check_branch
      %14 = sbr.rel (0) target = $region5
    $region4: #{tpu_custom_call.1} parent=1 // pred_region
      %s16 = ssub.s32 512, 512
      %17 = vsyncadd [#allocation5], %s16
      %s18 = sshll.u32 [#allocation4], 4
      %s19 = int_to_ptr.vmem [resolvable:$true] %s18
      %24 = dma.hbm_to_vmem [thread:$0]  %s1, 512, %s19, [#allocation5], 128, 128, 8
    $region5: #{tpu_custom_call.1} parent=1 // pred_fallthru
      _
    // Predicated region
    $region6: #{tpu_custom_call.1} parent=1 // pred_check
      _
    $region7: #{tpu_custom_call.1} parent=1 // pred_check_branch
      %26 = sbr.rel (0) target = $region9
    $region8: #{tpu_custom_call.1} parent=1 // pred_region
      %27 = dma.done [#allocation5], 512
    $region9: #{tpu_custom_call.1} parent=1 // pred_fallthru
      _
    %s28 = sld [smem:[#allocation3]]
    %s29 = smul.u32 %s28, 8
    %s30 = scalar_lea.vmem [#allocation4], %s29
    %v31 = vld [vmem:[%s30] sm:$0xff]
    %32 = vst [vmem:[#allocation7] sm:$0xff] %v31
    %s33 = sld [smem:[#allocation3 + $0x1]]
    %s34 = smul.u32 %s33, 8
    %s35 = scalar_lea.vmem [#allocation4], %s34
    %v36 = vld [vmem:[%s35] sm:$0xff]
    %37 = vst [vmem:[#allocation7 + $0x8] sm:$0xff] %v36
    // Predicated region
    $region10: #{tpu_custom_call.1} parent=1 // pred_check
      _
    $region11: #{tpu_custom_call.1} parent=1 // pred_check_branch
      %39 = sbr.rel (0) target = $region13
    $region12: #{tpu_custom_call.1} parent=1 // pred_region
      %s41 = ssub.s32 256, 256
      %42 = vsyncadd [#allocation6], %s41
      %s43 = sshll.u32 [#allocation7], 4
      %s44 = int_to_ptr.vmem [resolvable:$true] %s43
      %49 = dma.vmem_to_hbm [thread:$0]  %s44, 256, %s2, [#allocation6], 128, 128, 8
    $region13: #{tpu_custom_call.1} parent=1 // pred_fallthru
      _
    // Predicated region
    $region14: #{tpu_custom_call.1} parent=1 // pred_check
      _
    $region15: #{tpu_custom_call.1} parent=1 // pred_check_branch
      %51 = sbr.rel (0) target = $region17
    $region16: #{tpu_custom_call.1} parent=1 // pred_region
      %52 = dma.done [#allocation6], 256
    $region17: #{tpu_custom_call.1} parent=1 // pred_fallthru
      _
    %53 = vsyncpa [#allocation5], 1
    %54 = vsyncpa [#allocation6], 1

</llo_original>
